<compile_context>
chip_gen: v7x
topology: tpu7x:2x2x1
jax: 0.10.0
libtpu: 0.0.40
codegen_flags: <defaults>
</compile_context>

<pallas_src>
import functools

import jax
import jax.numpy as jnp
from jax import lax
from jax.experimental import pallas as pl
from jax.experimental.pallas import tpu as pltpu


def _round_up(x, m):
    return ((x + m - 1) // m) * m


# ----------------------------------------------------------------------------
# Kernel
# ----------------------------------------------------------------------------
def _mlp_kernel(x_ref, *refs, n_layers):
    """Fused MLP over one batch tile.

    refs = (w0, b0, ..., w_{L-1}, b_{L-1}, out_ref)
    Hidden layers: h = relu(h @ W + b) with f32 accumulation / f32 epilogue.
    Final layer is emitted transposed straight off the MXU as
    (out_size, TB) = sigmoid(W_L contracted-over-K with h), so the store is an
    unmasked lane-dense vst (no narrow-column masked stores, no relayout).
    """
    out_ref = refs[-1]
    p = refs[:-1]

    h = x_ref[...]                                    # MXU operand in stored dtype

    for i in range(n_layers - 1):
        w = p[2 * i][...]
        b = p[2 * i + 1][...]                         # (1, width) float32
        if h.dtype != w.dtype:
            h = h.astype(w.dtype)                     # keep MXU operands narrow
        h = jnp.dot(h, w, preferred_element_type=jnp.float32)
        h = jnp.maximum(h + b, 0.0)                   # f32 epilogue (VPU)

    w = p[2 * (n_layers - 1)][...]                    # (K, out)
    b = p[2 * (n_layers - 1) + 1][...]                # (out, 1) float32
    if h.dtype != w.dtype:
        h = h.astype(w.dtype)
    # (K,out) x (TB,K) contracted over K -> (out, TB): transpose folded into
    # the MXU operand feed, output is lane-dense along the batch.
    logits_t = lax.dot_general(
        w, h, dimension_numbers=(((0,), (1,)), ((), ())),
        preferred_element_type=jnp.float32)
    out = jax.nn.sigmoid(logits_t + b)                # EUP
    out_ref[...] = out.astype(out_ref.dtype)


# ----------------------------------------------------------------------------
# Parameter helpers
# ----------------------------------------------------------------------------
def init_simple_mlp_params(key, in_size, h_sizes, out_size, dtype=jnp.float32):
    """Xavier-uniform weights, zero biases (matches initialize_weights).

    Weights stored as (in_features, out_features); biases as (1, out)."""
    sizes = [in_size] + list(h_sizes) + [out_size]
    params = []
    for fan_in, fan_out in zip(sizes[:-1], sizes[1:]):
        key, sub = jax.random.split(key)
        bound = (6.0 / (fan_in + fan_out)) ** 0.5
        w = jax.random.uniform(sub, (fan_in, fan_out), dtype=dtype,
                               minval=-bound, maxval=bound)
        b = jnp.zeros((1, fan_out), dtype=dtype)
        params.append((w, b))
    return params


def _pad_params_for_mxu(params, lane_multiple=128):
    """Zero-pad hidden widths > lane_multiple up to a lane multiple.

    Numerically exact: padded hidden units get zero weights/bias -> relu(0)=0,
    and the next layer's padded input rows are zero.  Widths <= lane_multiple
    are left alone (no zero-FLOP padding for narrow layers) and the final
    output width is never padded."""
    padded = []
    prev_extra = 0
    n = len(params)
    for idx, (w, b) in enumerate(params):
        k, out = w.shape
        is_last = idx == n - 1
        if is_last or out <= lane_multiple:
            out_pad = out
        else:
            out_pad = _round_up(out, lane_multiple)
        k_pad = k + prev_extra
        w_p = jnp.pad(w, ((0, k_pad - k), (0, out_pad - out)))
        b_p = jnp.pad(b, ((0, 0), (0, out_pad - out)))
        padded.append((w_p, b_p))
        prev_extra = out_pad - out
    return padded


def _vmem_capacity_bytes():
    try:
        return int(pltpu.get_tpu_info().vmem_capacity_bytes)
    except Exception:
        return 64 * 1024 * 1024   # conservative fallback: v7x per-TC VMEM


# ----------------------------------------------------------------------------
# Wrapper
# ----------------------------------------------------------------------------
def simple_mlp_forward(x, mask, params, *, batch_tile=2048, mxu_dtype=None,
                       pad_features=True):
    """Pallas-backed forward. Returns (output, mask) like the PyTorch module.

    mxu_dtype: optional narrow dtype (e.g. jnp.bfloat16) for MXU operands
    (weights + activations); accumulation and epilogue remain f32."""
    B, in_features = x.shape
    out_size = params[-1][0].shape[1]
    n_layers = len(params)
    out_dtype = x.dtype

    if pad_features:
        params = _pad_params_for_mxu(params)

    # Weights in MXU dtype, biases in f32 (no per-layer in-kernel cast); the
    # last bias is a column vector to match the transposed (out, TB) output.
    flat = []
    for idx, (w, b) in enumerate(params):
        if mxu_dtype is not None:
            w = w.astype(mxu_dtype)
        b = b.astype(jnp.float32)
        if idx == n_layers - 1:
            b = b.reshape(-1, 1)                       # (out, 1)
        flat.extend([w, b])
    if mxu_dtype is not None:
        x = x.astype(mxu_dtype)

    widths = [in_features] + [w.shape[1] for w, _ in params]
    param_bytes = sum(a.size * a.dtype.itemsize for a in flat)
    x_item = jnp.dtype(x.dtype).itemsize
    out_item = jnp.dtype(out_dtype).itemsize

    # ---- VMEM-budget-aware batch tile --------------------------------------
    vmem_cap = _vmem_capacity_bytes()
    per_row_bytes = (2 * in_features * x_item           # double-buffered x tile
                     + 2 * out_size * out_item          # double-buffered out tile
                     + 2 * 4 * max(widths))             # ~2 live f32 intermediates
    budget = int(0.6 * vmem_cap) - param_bytes
    if budget > 128 * per_row_bytes:
        tb_cap = max(128, (budget // per_row_bytes) // 128 * 128)
    else:
        tb_cap = 128
    batch_tile = max(128, min(batch_tile, tb_cap))

    # ---- batch tiling --------------------------------------------------------
    if B <= 256:
        tb = max(8, _round_up(B, 8))                    # single sublane-aligned tile
        b_pad = tb
    else:
        # >= 2 tiles so ("parallel",) shards the batch across both TensorCores
        # on v7x; tb a multiple of 128 keeps the lane-dense (out_size, tb)
        # output block legal when the grid has more than one step.
        tb = min(batch_tile, _round_up(pl.cdiv(B, 2), 128))
        b_pad = _round_up(B, tb)
    grid = (pl.cdiv(b_pad, tb),)

    if b_pad != B:
        x = jnp.pad(x, ((0, b_pad - B), (0, 0)))

    # ---- BlockSpecs: stream x/out over batch, keep params resident ----------
    x_spec = pl.BlockSpec((tb, in_features), lambda i: (i, 0))
    out_shape = jax.ShapeDtypeStruct((out_size, b_pad), out_dtype)  # lane-dense
    out_spec = pl.BlockSpec((out_size, tb), lambda i: (0, i))

    def _param_specs(single_buffer):
        specs = []
        for a in flat:
            if single_buffer:
                # Constant index_map across the grid -> no need to double-buffer.
                specs.append(pl.BlockSpec(a.shape, lambda i: (0, 0),
                                          pipeline_mode=pl.Buffered(1)))
            else:
                specs.append(pl.BlockSpec(a.shape, lambda i: (0, 0)))
        return specs

    # ---- cost estimate + VMEM limit ------------------------------------------
    flops = 2 * b_pad * sum(k * n for k, n in zip(widths[:-1], widths[1:]))
    cost = pl.CostEstimate(
        flops=int(flops),
        transcendentals=int(2 * b_pad * out_size),       # sigmoid ~ exp + recip
        bytes_accessed=int(x.size * x_item + param_bytes
                           + out_size * b_pad * out_item))

    needed = param_bytes + tb * per_row_bytes
    # >= 32 MiB (lifts v5e's 16 MiB scoped default), <= 75% of physical VMEM
    # (~96 MiB on v5e/v6e with 128 MiB, ~48 MiB on v7x with 64 MiB).
    vmem_limit = int(min(max(2 * needed, 32 * 1024 * 1024),
                         max(32 * 1024 * 1024, int(0.75 * vmem_cap))))

    kernel = functools.partial(_mlp_kernel, n_layers=n_layers)

    def _run(single_buffer):
        return pl.pallas_call(
            kernel,
            out_shape=out_shape,
            grid=grid,
            in_specs=[x_spec] + _param_specs(single_buffer),
            out_specs=out_spec,
            compiler_params=pltpu.CompilerParams(
                dimension_semantics=("parallel",),
                vmem_limit_bytes=vmem_limit),
            cost_estimate=cost,
        )(x, *flat)

    try:
        out_t = _run(True)
    except Exception:
        # TODO(synk): pl.Buffered(1) rejected on this jax build; fall back to
        # default double-buffered parameter specs.
        out_t = _run(False)

    out = out_t[:, :B].T                                 # (B, out_size)
    if out_size == 1:
        out = out[:, 0]                                  # torch .squeeze(-1)
    return out, mask


# ----------------------------------------------------------------------------
# Reference + test
# ----------------------------------------------------------------------------
def _reference_forward(x, params):
    h = x.astype(jnp.float32)
    n = len(params)
    for i, (w, b) in enumerate(params):
        h = h @ w.astype(jnp.float32) + b.astype(jnp.float32)
        h = jnp.maximum(h, 0.0) if i < n - 1 else jax.nn.sigmoid(h)
    if params[-1][0].shape[1] == 1:
        h = jnp.squeeze(h, axis=-1)
    return h


if __name__ == "__main__":
    # --- small config matching the module (out_size=1 -> squeeze path) -------
    in_size, h_sizes, out_size = 16, [32, 32], 1
    batch = 8

    key = jax.random.PRNGKey(0)
    key, kx, km = jax.random.split(key, 3)
    x = jax.random.normal(kx, (batch, in_size), dtype=jnp.float32)
    mask = (jax.random.uniform(km, (batch,)) > 0.5).astype(jnp.float32)
    params = init_simple_mlp_params(key, in_size, h_sizes, out_size)

    out, mask_out = simple_mlp_forward(x, mask, params)
    out = jax.block_until_ready(out)
    mask_out = jax.block_until_ready(mask_out)

    ref = _reference_forward(x, params)
    assert out.shape == (batch,), out.shape
    assert jnp.allclose(out, ref, atol=1e-5, rtol=1e-5)
    assert jnp.array_equal(mask_out, mask)

    # --- multi-tile grid (>= 2 tiles, v7x megacore) + out_size > 1 lane-dense -
    in2, h2, out2_size, batch2 = 16, [32, 32], 3, 1030
    key, kx2 = jax.random.split(key)
    x2 = jax.random.normal(kx2, (batch2, in2), dtype=jnp.float32)
    mask2 = jnp.ones((batch2,), dtype=jnp.float32)
    params2 = init_simple_mlp_params(key, in2, h2, out2_size)

    out2, _ = simple_mlp_forward(x2, mask2, params2)
    out2 = jax.block_until_ready(out2)
    ref2 = _reference_forward(x2, params2)
    assert out2.shape == (batch2, out2_size), out2.shape
    assert jnp.allclose(out2, ref2, atol=1e-5, rtol=1e-5)

    # --- bf16 MXU-operand path (f32 accumulation / epilogue), looser tolerance
    out3, _ = simple_mlp_forward(x, mask, params, mxu_dtype=jnp.bfloat16)
    out3 = jax.block_until_ready(out3)
    assert out3.shape == (batch,), out3.shape
    assert jnp.allclose(out3, ref, atol=2e-2, rtol=2e-2)

    print("KERNEL_OK")
</pallas_src>

<mosaic_0001>
module attributes {stable_mosaic.version = 11 : i64} {
  func.func @_mlp_kernel(%arg0: i32, %arg1: memref<8x16xf32, #tpu.memory_space<vmem>>, %arg2: memref<16x32xf32, #tpu.memory_space<vmem>>, %arg3: memref<1x32xf32, #tpu.memory_space<vmem>>, %arg4: memref<32x32xf32, #tpu.memory_space<vmem>>, %arg5: memref<1x32xf32, #tpu.memory_space<vmem>>, %arg6: memref<32x1xf32, #tpu.memory_space<vmem>>, %arg7: memref<1x1xf32, #tpu.memory_space<vmem>>, %arg8: memref<1x8xf32, #tpu.memory_space<vmem>>) attributes {dimension_semantics = [#tpu.dimension_semantics<parallel>], iteration_bounds = array<i64: 1>, scalar_prefetch = 0 : i64, scratch_operands = 0 : i64, tpu.core_type = #tpu.core_type<tc>, window_params = [{transform_indices = @transform_0, window_bounds = array<i64: 8, 16>}, {pipeline_mode = #tpu.pipeline_mode<synchronous>, transform_indices = @transform_1, window_bounds = array<i64: 16, 32>}, {pipeline_mode = #tpu.pipeline_mode<synchronous>, transform_indices = @transform_2, window_bounds = array<i64: 1, 32>}, {pipeline_mode = #tpu.pipeline_mode<synchronous>, transform_indices = @transform_3, window_bounds = array<i64: 32, 32>}, {pipeline_mode = #tpu.pipeline_mode<synchronous>, transform_indices = @transform_4, window_bounds = array<i64: 1, 32>}, {pipeline_mode = #tpu.pipeline_mode<synchronous>, transform_indices = @transform_5, window_bounds = array<i64: 32, 1>}, {pipeline_mode = #tpu.pipeline_mode<synchronous>, transform_indices = @transform_6, window_bounds = array<i64: 1, 1>}, {transform_indices = @transform_7, window_bounds = array<i64: 1, 8>}]} {
    %c0 = arith.constant 0 : index
    %c0_0 = arith.constant 0 : index
    %0 = vector.load %arg1[%c0, %c0_0] : memref<8x16xf32, #tpu.memory_space<vmem>>, vector<8x16xf32>
    %c0_1 = arith.constant 0 : index
    %c0_2 = arith.constant 0 : index
    %1 = vector.load %arg2[%c0_1, %c0_2] : memref<16x32xf32, #tpu.memory_space<vmem>>, vector<16x32xf32>
    %c0_3 = arith.constant 0 : index
    %c0_4 = arith.constant 0 : index
    %2 = vector.load %arg3[%c0_3, %c0_4] : memref<1x32xf32, #tpu.memory_space<vmem>>, vector<1x32xf32>
    %cst = arith.constant dense<0.000000e+00> : vector<8x32xf32>
    %3 = tpu.matmul %0, %1, %cst {dimension_numbers = #tpu.dot_dimension_numbers<[1], [0], [0], [1], [0, 0, 1, 1], [], []>} : vector<8x16xf32>, vector<16x32xf32>, vector<8x32xf32> -> vector<8x32xf32>
    %4 = vector.broadcast %2 : vector<1x32xf32> to vector<8x32xf32>
    %5 = arith.addf %3, %4 : vector<8x32xf32>
    %cst_5 = arith.constant 0.000000e+00 : f32
    %6 = vector.broadcast %cst_5 : f32 to vector<8x32xf32>
    %7 = arith.maximumf %5, %6 : vector<8x32xf32>
    %c0_6 = arith.constant 0 : index
    %c0_7 = arith.constant 0 : index
    %8 = vector.load %arg4[%c0_6, %c0_7] : memref<32x32xf32, #tpu.memory_space<vmem>>, vector<32x32xf32>
    %c0_8 = arith.constant 0 : index
    %c0_9 = arith.constant 0 : index
    %9 = vector.load %arg5[%c0_8, %c0_9] : memref<1x32xf32, #tpu.memory_space<vmem>>, vector<1x32xf32>
    %cst_10 = arith.constant dense<0.000000e+00> : vector<8x32xf32>
    %10 = tpu.matmul %7, %8, %cst_10 {dimension_numbers = #tpu.dot_dimension_numbers<[1], [0], [0], [1], [0, 0, 1, 1], [], []>} : vector<8x32xf32>, vector<32x32xf32>, vector<8x32xf32> -> vector<8x32xf32>
    %11 = vector.broadcast %9 : vector<1x32xf32> to vector<8x32xf32>
    %12 = arith.addf %10, %11 : vector<8x32xf32>
    %cst_11 = arith.constant 0.000000e+00 : f32
    %13 = vector.broadcast %cst_11 : f32 to vector<8x32xf32>
    %14 = arith.maximumf %12, %13 : vector<8x32xf32>
    %c0_12 = arith.constant 0 : index
    %c0_13 = arith.constant 0 : index
    %15 = vector.load %arg6[%c0_12, %c0_13] : memref<32x1xf32, #tpu.memory_space<vmem>>, vector<32x1xf32>
    %c0_14 = arith.constant 0 : index
    %c0_15 = arith.constant 0 : index
    %16 = vector.load %arg7[%c0_14, %c0_15] : memref<1x1xf32, #tpu.memory_space<vmem>>, vector<1x1xf32>
    %cst_16 = arith.constant dense<0.000000e+00> : vector<1x8xf32>
    %17 = tpu.matmul %15, %14, %cst_16 {dimension_numbers = #tpu.dot_dimension_numbers<[0], [1], [1], [0], [0, 1, 1, 0], [], []>} : vector<32x1xf32>, vector<8x32xf32>, vector<1x8xf32> -> vector<1x8xf32>
    %18 = vector.broadcast %16 : vector<1x1xf32> to vector<1x8xf32>
    %19 = arith.addf %17, %18 : vector<1x8xf32>
    %20 = arith.negf %19 : vector<1x8xf32>
    %21 = math.exp %20 : vector<1x8xf32>
    %cst_17 = arith.constant 1.000000e+00 : f32
    %22 = vector.broadcast %cst_17 : f32 to vector<1x8xf32>
    %23 = arith.addf %22, %21 : vector<1x8xf32>
    %24 = arith.divf %22, %23 : vector<1x8xf32>
    %c0_18 = arith.constant 0 : index
    %c0_19 = arith.constant 0 : index
    %25 = vector.load %arg8[%c0_18, %c0_19] : memref<1x8xf32, #tpu.memory_space<vmem>>, vector<1x8xf32>
    tpu.vector_store %arg8[%c0_18, %c0_19], %24 {strides = array<i32>} : memref<1x8xf32, #tpu.memory_space<vmem>>, vector<1x8xf32>,
    return
  }
  func.func @transform_0(%arg0: i32) -> (i32, i32) {
    %c0_i32 = arith.constant 0 : i32
    %c0_i32_0 = arith.constant 0 : i32
    return %arg0, %c0_i32 : i32, i32
  }
  func.func @transform_1(%arg0: i32) -> (i32, i32) {
    %c0_i32 = arith.constant 0 : i32
    %c0_i32_0 = arith.constant 0 : i32
    %c0_i32_1 = arith.constant 0 : i32
    return %c0_i32, %c0_i32_0 : i32, i32
  }
  func.func @transform_2(%arg0: i32) -> (i32, i32) {
    %c0_i32 = arith.constant 0 : i32
    %c0_i32_0 = arith.constant 0 : i32
    %c0_i32_1 = arith.constant 0 : i32
    return %c0_i32, %c0_i32_0 : i32, i32
  }
  func.func @transform_3(%arg0: i32) -> (i32, i32) {
    %c0_i32 = arith.constant 0 : i32
    %c0_i32_0 = arith.constant 0 : i32
    %c0_i32_1 = arith.constant 0 : i32
    return %c0_i32, %c0_i32_0 : i32, i32
  }
  func.func @transform_4(%arg0: i32) -> (i32, i32) {
    %c0_i32 = arith.constant 0 : i32
    %c0_i32_0 = arith.constant 0 : i32
    %c0_i32_1 = arith.constant 0 : i32
    return %c0_i32, %c0_i32_0 : i32, i32
  }
  func.func @transform_5(%arg0: i32) -> (i32, i32) {
    %c0_i32 = arith.constant 0 : i32
    %c0_i32_0 = arith.constant 0 : i32
    %c0_i32_1 = arith.constant 0 : i32
    return %c0_i32, %c0_i32_0 : i32, i32
  }
  func.func @transform_6(%arg0: i32) -> (i32, i32) {
    %c0_i32 = arith.constant 0 : i32
    %c0_i32_0 = arith.constant 0 : i32
    %c0_i32_1 = arith.constant 0 : i32
    return %c0_i32, %c0_i32_0 : i32, i32
  }
  func.func @transform_7(%arg0: i32) -> (i32, i32) {
    %c0_i32 = arith.constant 0 : i32
    %c0_i32_0 = arith.constant 0 : i32
    return %c0_i32, %arg0 : i32, i32
  }
}

module attributes {stable_mosaic.version = 11 : i64} {
  func.func @_mlp_kernel(%arg0: i32, %arg1: memref<8x16xf32, #tpu.memory_space<vmem>>, %arg2: memref<16x32xf32, #tpu.memory_space<vmem>>, %arg3: memref<1x32xf32, #tpu.memory_space<vmem>>, %arg4: memref<32x32xf32, #tpu.memory_space<vmem>>, %arg5: memref<1x32xf32, #tpu.memory_space<vmem>>, %arg6: memref<32x1xf32, #tpu.memory_space<vmem>>, %arg7: memref<1x1xf32, #tpu.memory_space<vmem>>, %arg8: memref<1x8xf32, #tpu.memory_space<vmem>>) attributes {dimension_semantics = [#tpu.dimension_semantics<parallel>], iteration_bounds = array<i64: 1>, scalar_prefetch = 0 : i64, scratch_operands = 0 : i64, tpu.core_type = #tpu.core_type<tc>, window_params = [{transform_indices = @transform_0, window_bounds = array<i64: 8, 16>}, {pipeline_mode = #tpu.pipeline_mode<synchronous>, transform_indices = @transform_1, window_bounds = array<i64: 16, 32>}, {pipeline_mode = #tpu.pipeline_mode<synchronous>, transform_indices = @transform_2, window_bounds = array<i64: 1, 32>}, {pipeline_mode = #tpu.pipeline_mode<synchronous>, transform_indices = @transform_3, window_bounds = array<i64: 32, 32>}, {pipeline_mode = #tpu.pipeline_mode<synchronous>, transform_indices = @transform_4, window_bounds = array<i64: 1, 32>}, {pipeline_mode = #tpu.pipeline_mode<synchronous>, transform_indices = @transform_5, window_bounds = array<i64: 32, 1>}, {pipeline_mode = #tpu.pipeline_mode<synchronous>, transform_indices = @transform_6, window_bounds = array<i64: 1, 1>}, {transform_indices = @transform_7, window_bounds = array<i64: 1, 8>}]} {
    %c0 = arith.constant 0 : index
    %c0_0 = arith.constant 0 : index
    %0 = vector.load %arg1[%c0, %c0_0] : memref<8x16xf32, #tpu.memory_space<vmem>>, vector<8x16xf32>
    %c0_1 = arith.constant 0 : index
    %c0_2 = arith.constant 0 : index
    %1 = vector.load %arg2[%c0_1, %c0_2] : memref<16x32xf32, #tpu.memory_space<vmem>>, vector<16x32xf32>
    %c0_3 = arith.constant 0 : index
    %c0_4 = arith.constant 0 : index
    %2 = vector.load %arg3[%c0_3, %c0_4] : memref<1x32xf32, #tpu.memory_space<vmem>>, vector<1x32xf32>
    %cst = arith.constant dense<0.000000e+00> : vector<8x32xf32>
    %3 = tpu.matmul %0, %1, %cst {dimension_numbers = #tpu.dot_dimension_numbers<[1], [0], [0], [1], [0, 0, 1, 1], [], []>} : vector<8x16xf32>, vector<16x32xf32>, vector<8x32xf32> -> vector<8x32xf32>
    %4 = vector.broadcast %2 : vector<1x32xf32> to vector<8x32xf32>
    %5 = arith.addf %3, %4 : vector<8x32xf32>
    %cst_5 = arith.constant 0.000000e+00 : f32
    %6 = vector.broadcast %cst_5 : f32 to vector<8x32xf32>
    %7 = arith.maximumf %5, %6 : vector<8x32xf32>
    %c0_6 = arith.constant 0 : index
    %c0_7 = arith.constant 0 : index
    %8 = vector.load %arg4[%c0_6, %c0_7] : memref<32x32xf32, #tpu.memory_space<vmem>>, vector<32x32xf32>
    %c0_8 = arith.constant 0 : index
    %c0_9 = arith.constant 0 : index
    %9 = vector.load %arg5[%c0_8, %c0_9] : memref<1x32xf32, #tpu.memory_space<vmem>>, vector<1x32xf32>
    %cst_10 = arith.constant dense<0.000000e+00> : vector<8x32xf32>
    %10 = tpu.matmul %7, %8, %cst_10 {dimension_numbers = #tpu.dot_dimension_numbers<[1], [0], [0], [1], [0, 0, 1, 1], [], []>} : vector<8x32xf32>, vector<32x32xf32>, vector<8x32xf32> -> vector<8x32xf32>
    %11 = vector.broadcast %9 : vector<1x32xf32> to vector<8x32xf32>
    %12 = arith.addf %10, %11 : vector<8x32xf32>
    %cst_11 = arith.constant 0.000000e+00 : f32
    %13 = vector.broadcast %cst_11 : f32 to vector<8x32xf32>
    %14 = arith.maximumf %12, %13 : vector<8x32xf32>
    %c0_12 = arith.constant 0 : index
    %c0_13 = arith.constant 0 : index
    %15 = vector.load %arg6[%c0_12, %c0_13] : memref<32x1xf32, #tpu.memory_space<vmem>>, vector<32x1xf32>
    %c0_14 = arith.constant 0 : index
    %c0_15 = arith.constant 0 : index
    %16 = vector.load %arg7[%c0_14, %c0_15] : memref<1x1xf32, #tpu.memory_space<vmem>>, vector<1x1xf32>
    %cst_16 = arith.constant dense<0.000000e+00> : vector<1x8xf32>
    %17 = tpu.matmul %15, %14, %cst_16 {dimension_numbers = #tpu.dot_dimension_numbers<[0], [1], [1], [0], [0, 1, 1, 0], [], []>} : vector<32x1xf32>, vector<8x32xf32>, vector<1x8xf32> -> vector<1x8xf32>
    %18 = vector.broadcast %16 : vector<1x1xf32> to vector<1x8xf32>
    %19 = arith.addf %17, %18 : vector<1x8xf32>
    %20 = arith.negf %19 : vector<1x8xf32>
    %21 = math.exp %20 : vector<1x8xf32>
    %cst_17 = arith.constant 1.000000e+00 : f32
    %22 = vector.broadcast %cst_17 : f32 to vector<1x8xf32>
    %23 = arith.addf %22, %21 : vector<1x8xf32>
    %24 = arith.divf %22, %23 : vector<1x8xf32>
    %c0_18 = arith.constant 0 : index
    %c0_19 = arith.constant 0 : index
    %25 = vector.load %arg8[%c0_18, %c0_19] : memref<1x8xf32, #tpu.memory_space<vmem>>, vector<1x8xf32>
    tpu.vector_store %arg8[%c0_18, %c0_19], %24 {strides = array<i32>} : memref<1x8xf32, #tpu.memory_space<vmem>>, vector<1x8xf32>,
    return
  }
  func.func @transform_0(%arg0: i32) -> (i32, i32) {
    %c0_i32 = arith.constant 0 : i32
    %c0_i32_0 = arith.constant 0 : i32
    return %arg0, %c0_i32 : i32, i32
  }
  func.func @transform_1(%arg0: i32) -> (i32, i32) {
    %c0_i32 = arith.constant 0 : i32
    %c0_i32_0 = arith.constant 0 : i32
    %c0_i32_1 = arith.constant 0 : i32
    return %c0_i32, %c0_i32_0 : i32, i32
  }
  func.func @transform_2(%arg0: i32) -> (i32, i32) {
    %c0_i32 = arith.constant 0 : i32
    %c0_i32_0 = arith.constant 0 : i32
    %c0_i32_1 = arith.constant 0 : i32
    return %c0_i32, %c0_i32_0 : i32, i32
  }
  func.func @transform_3(%arg0: i32) -> (i32, i32) {
    %c0_i32 = arith.constant 0 : i32
    %c0_i32_0 = arith.constant 0 : i32
    %c0_i32_1 = arith.constant 0 : i32
    return %c0_i32, %c0_i32_0 : i32, i32
  }
  func.func @transform_4(%arg0: i32) -> (i32, i32) {
    %c0_i32 = arith.constant 0 : i32
    %c0_i32_0 = arith.constant 0 : i32
    %c0_i32_1 = arith.constant 0 : i32
    return %c0_i32, %c0_i32_0 : i32, i32
  }
  func.func @transform_5(%arg0: i32) -> (i32, i32) {
    %c0_i32 = arith.constant 0 : i32
    %c0_i32_0 = arith.constant 0 : i32
    %c0_i32_1 = arith.constant 0 : i32
    return %c0_i32, %c0_i32_0 : i32, i32
  }
  func.func @transform_6(%arg0: i32) -> (i32, i32) {
    %c0_i32 = arith.constant 0 : i32
    %c0_i32_0 = arith.constant 0 : i32
    %c0_i32_1 = arith.constant 0 : i32
    return %c0_i32, %c0_i32_0 : i32, i32
  }
  func.func @transform_7(%arg0: i32) -> (i32, i32) {
    %c0_i32 = arith.constant 0 : i32
    %c0_i32_0 = arith.constant 0 : i32
    return %c0_i32, %arg0 : i32, i32
  }
}

</mosaic_0001>

<llo_original>
// kernel: tpu_custom_call.1
$region0: #{tpu_custom_call.1}
  #allocation0 [shape = 'u32[]', space=smem, size = 0x4, offset = 0x4, fixed_abs, tag = 'smem constant byte address 0x4 - core index']
  #allocation1 [shape = 'u32[144,128]{1,0:T(1,128)}', space=vmem, size = 0x12000, scoped, tag = 'internal scratch']
  #allocation2 [shape = 'f32[1,1]{1,0:T(1,128)S(1)}', space=vmem, size = 0x200, scoped, tag = 'scoped memory for tpu_custom_call.1']
  %s0 = inlined_call_operand.hbm [shape: f32[8,16], index: 0, kind: input, shape index: {}]
  %s1 = inlined_call_operand.vmem [shape: f32[16,32], index: 1, kind: input, shape index: {}]
  %s2 = inlined_call_operand.hbm [shape: f32[1,32], index: 2, kind: input, shape index: {}]
  %s3 = inlined_call_operand.vmem [shape: f32[32,32], index: 3, kind: input, shape index: {}]
  %s4 = inlined_call_operand.vmem [shape: f32[1,32], index: 4, kind: input, shape index: {}]
  %s5 = inlined_call_operand.vmem [shape: f32[32,1], index: 5, kind: input, shape index: {}]
  %s6 = inlined_call_operand.<no memory space> [shape: f32[1,1], index: 6, kind: input, shape index: {}]
  %s7 = inlined_call_operand.hbm [shape: f32[1,8], index: 7, kind: output, shape index: {}]
  %s8 = sld [smem:[#allocation0]]
  $region46: #{tpu_custom_call.1} parent=0
    _
  %s10 = ssub.s32 1, %s8
  %s11 = scalar_select 0, %s10, %s8
  %v12 = vstv %s6
  %13 = vst [vmem:[#allocation2] sm:$0x1] %v12
  $region1: #{tpu_custom_call.1} parent=0
    #allocation3 [shape = 'u8[4096]{0}', space=vmem, size = 0x1000, scoped, tag = 'input window, operand 0, single buffered']
    #allocation4 [shape = 's32[1]{0}', space=sflag, size = 0x4, scoped, tag = 'scoped memory for tpu_custom_call.1']
    #allocation5 [shape = 's32[1]{0}', space=sflag, size = 0x4, scoped, tag = 'scoped memory for tpu_custom_call.1']
    #allocation6 [shape = 'u8[512]{0}', space=vmem, size = 0x400, scoped, tag = 'input window, operand 2, single buffered']
    #allocation7 [shape = 's32[1]{0}', space=sflag, size = 0x4, scoped, tag = 'scoped memory for tpu_custom_call.1']
    #allocation8 [shape = 'u8[512]{0}', space=vmem, size = 0x400, scoped, tag = 'output window, operand 0, single buffered']
    %14 = vsyncpa [#allocation4], 0
    %15 = vsyncpa [#allocation7], 0
    %16 = vsyncpa [#allocation5], 0
    // Predicated region
    $region2: #{tpu_custom_call.1} parent=1 // pred_check
      _
    $region3: #{tpu_custom_call.1} parent=1 // pred_check_branch
      %18 = sbr.rel (0) target = $region5
    $region4: #{tpu_custom_call.1} parent=1 // pred_region
      %s20 = ssub.s32 128, 128
      %21 = vsyncadd [#allocation4], %s20
      %s23 = sshll.u32 [#allocation3], 4
      %s24 = int_to_ptr.vmem [resolvable:$true] %s23
      %26 = dma.hbm_to_vmem [thread:$0]  %s0, 128, %s24, [#allocation4]
    $region5: #{tpu_custom_call.1} parent=1 // pred_fallthru
      _
    // Predicated region
    $region6: #{tpu_custom_call.1} parent=1 // pred_check
      _
    $region7: #{tpu_custom_call.1} parent=1 // pred_check_branch
      %28 = sbr.rel (0) target = $region9
    $region8: #{tpu_custom_call.1} parent=1 // pred_region
      _
    $region9: #{tpu_custom_call.1} parent=1 // pred_fallthru
      _
    // Predicated region
    $region10: #{tpu_custom_call.1} parent=1 // pred_check
      _
    $region11: #{tpu_custom_call.1} parent=1 // pred_check_branch
      %30 = sbr.rel (0) target = $region13
    $region12: #{tpu_custom_call.1} parent=1 // pred_region
      %s32 = ssub.s32 16, 16
      %33 = vsyncadd [#allocation7], %s32
      %s35 = sshll.u32 [#allocation6], 4
      %s36 = int_to_ptr.vmem [resolvable:$true] %s35
      %38 = dma.hbm_to_vmem [thread:$0]  %s2, 16, %s36, [#allocation7]
    $region13: #{tpu_custom_call.1} parent=1 // pred_fallthru
      _
    // Predicated region
    $region14: #{tpu_custom_call.1} parent=1 // pred_check
      _
    $region15: #{tpu_custom_call.1} parent=1 // pred_check_branch
      %40 = sbr.rel (0) target = $region17
    $region16: #{tpu_custom_call.1} parent=1 // pred_region
      _
    $region17: #{tpu_custom_call.1} parent=1 // pred_fallthru
      _
    // Predicated region
    $region18: #{tpu_custom_call.1} parent=1 // pred_check
      _
    $region19: #{tpu_custom_call.1} parent=1 // pred_check_branch
      %42 = sbr.rel (0) target = $region21
    $region20: #{tpu_custom_call.1} parent=1 // pred_region
      _
    $region21: #{tpu_custom_call.1} parent=1 // pred_fallthru
      _
    // Predicated region
    $region22: #{tpu_custom_call.1} parent=1 // pred_check
      _
    $region23: #{tpu_custom_call.1} parent=1 // pred_check_branch
      %44 = sbr.rel (0) target = $region25
    $region24: #{tpu_custom_call.1} parent=1 // pred_region
      _
    $region25: #{tpu_custom_call.1} parent=1 // pred_fallthru
      _
    // Predicated region
    $region26: #{tpu_custom_call.1} parent=1 // pred_check
      _
    $region27: #{tpu_custom_call.1} parent=1 // pred_check_branch
      %46 = sbr.rel (0) target = $region29
    $region28: #{tpu_custom_call.1} parent=1 // pred_region
      _
    $region29: #{tpu_custom_call.1} parent=1 // pred_fallthru
      _
    // Predicated region
    $region30: #{tpu_custom_call.1} parent=1 // pred_check
      _
    $region31: #{tpu_custom_call.1} parent=1 // pred_check_branch
      %48 = sbr.rel (0) target = $region33
    $region32: #{tpu_custom_call.1} parent=1 // pred_region
      %49 = dma.done [#allocation4], 128
    $region33: #{tpu_custom_call.1} parent=1 // pred_fallthru
      _
    // Predicated region
    $region34: #{tpu_custom_call.1} parent=1 // pred_check
      _
    $region35: #{tpu_custom_call.1} parent=1 // pred_check_branch
      %51 = sbr.rel (0) target = $region37
    $region36: #{tpu_custom_call.1} parent=1 // pred_region
      %52 = dma.done [#allocation7], 16
    $region37: #{tpu_custom_call.1} parent=1 // pred_fallthru
      _
    %v53 = vld [vmem:[#allocation3] sm:$0xff]
    %v54 = vld [vmem:[%s1] sm:$0xff]
    %v55 = vld [vmem:[%s1 + $0x8] sm:$0xff]
    %v56 = vld [vmem:[#allocation6] sm:$0x1]
    %v58 = vlaneseq
    %v59 = vshrl.u32 %v58, 7
    %v60 = vsub.s32 0, %v59
    %v61 = vrot.slane %v56, %v60
    %vm63 = vcmask 130048
    %v65 = vsel %vm63, %v53, 0
    %67 = vmatprep.subr.mxu0 0.0
    %68 = vmatpush1.msra.mxu0 %v54
    %69 = vmatprep.subr.mxu0 0.0
    %70 = vmatpush1.msra.mxu0 %v55
    %71 = vmatprep.subr.mxu0 0.0
    %72 = vmatpush1.msra.mxu0 0.0
    %73 = vmatprep.subr.mxu0 0.0
    %74 = vmatpush1.msra.mxu0 0.0
    %75 = vmatprep.subr.mxu0 0.0
    %76 = vmatpush1.msra.mxu0 0.0
    %77 = vmatprep.subr.mxu0 0.0
    %78 = vmatpush1.msra.mxu0 0.0
    %79 = vmatprep.subr.mxu0 0.0
    %80 = vmatpush1.msra.mxu0 0.0
    %81 = vmatprep.subr.mxu0 0.0
    %82 = vmatpush1.msra.mxu0 0.0
    %83 = vmatprep.subr.mxu0 0.0
    %84 = vmatpush1.msra.mxu0 0.0
    %85 = vmatprep.subr.mxu0 0.0
    %86 = vmatpush1.msra.mxu0 0.0
    %87 = vmatprep.subr.mxu0 0.0
    %88 = vmatpush1.msra.mxu0 0.0
    %89 = vmatprep.subr.mxu0 0.0
    %90 = vmatpush1.msra.mxu0 0.0
    %91 = vmatprep.subr.mxu0 0.0
    %92 = vmatpush1.msra.mxu0 0.0
    %93 = vmatprep.subr.mxu0 0.0
    %94 = vmatpush1.msra.mxu0 0.0
    %95 = vmatprep.subr.mxu0 0.0
    %96 = vmatpush1.msra.mxu0 0.0
    %97 = vmatprep.subr.mxu0 0.0
    %98 = vmatpush1.msra.mxu0 0.0
    %99 = vmatprep.subr.mxu0 0.0
    %100 = vmatpush1.msra.mxu0 0.0
    %101 = vmatprep.subr.mxu0 0.0
    %102 = vmatpush1.msra.mxu0 0.0
    %103 = vmatprep.subr.mxu0 0.0
    %104 = vmatpush1.msra.mxu0 0.0
    %105 = vmatprep.subr.mxu0 0.0
    %106 = vmatpush1.msra.mxu0 0.0
    %107 = vmatprep.subr.mxu0 0.0
    %108 = vmatpush1.msra.mxu0 0.0
    %109 = vmatprep.subr.mxu0 0.0
    %110 = vmatpush1.msra.mxu0 0.0
    %111 = vmatprep.subr.mxu0 0.0
    %112 = vmatpush1.msra.mxu0 0.0
    %113 = vmatprep.subr.mxu0 0.0
    %114 = vmatpush1.msra.mxu0 0.0
    %115 = vmatprep.subr.mxu0 0.0
    %116 = vmatpush1.msra.mxu0 0.0
    %117 = vmatprep.subr.mxu0 0.0
    %118 = vmatpush1.msra.mxu0 0.0
    %119 = vmatprep.subr.mxu0 0.0
    %120 = vmatpush1.msra.mxu0 0.0
    %121 = vmatprep.subr.mxu0 0.0
    %122 = vmatpush1.msra.mxu0 0.0
    %123 = vmatprep.subr.mxu0 0.0
    %124 = vmatpush1.msra.mxu0 0.0
    %125 = vmatprep.subr.mxu0 0.0
    %126 = vmatpush1.msra.mxu0 0.0
    %127 = vmatprep.subr.mxu0 0.0
    %128 = vmatpush1.msra.mxu0 0.0
    %129 = vmatprep.subr.mxu0 0.0
    %130 = vmatpush1.msra.mxu0 0.0
    %131 = vmatprep.mubr.f32.mxu0 0.0
    %132 = vmatmul.mubr.f32.gmra.mrb[0].mxu0 %v65
    %v133 = vpop.f32.mrb[0].mxu0
    %v134 = vadd.f32 %v61, %v133
    %v135 = vpop.f32.mrb[0].mxu0
    %136 = vdwg.mxu0
    %v137 = vmax.f32 %v134, 0.0
    %v138 = vld [vmem:[%s3] sm:$0xff]
    %v139 = vld [vmem:[%s3 + $0x8] sm:$0xff]
    %v140 = vld [vmem:[%s3 + $0x10] sm:$0xff]
    %v141 = vld [vmem:[%s3 + $0x18] sm:$0xff]
    %v142 = vld [vmem:[%s4] sm:$0x1]
    %v144 = vlaneseq
    %v145 = vshrl.u32 %v144, 7
    %v146 = vsub.s32 0, %v145
    %v147 = vrot.slane %v142, %v146
    %vm149 = vcmask 261120
    %v151 = vsel %vm149, %v137, 0
    %153 = vmatprep.subr.mxu0 0.0
    %154 = vmatpush1.msra.mxu0 %v138
    %155 = vmatprep.subr.mxu0 0.0
    %156 = vmatpush1.msra.mxu0 %v139
    %157 = vmatprep.subr.mxu0 0.0
    %158 = vmatpush1.msra.mxu0 %v140
    %159 = vmatprep.subr.mxu0 0.0
    %160 = vmatpush1.msra.mxu0 %v141
    %161 = vmatprep.subr.mxu0 0.0
    %162 = vmatpush1.msra.mxu0 0.0
    %163 = vmatprep.subr.mxu0 0.0
    %164 = vmatpush1.msra.mxu0 0.0
    %165 = vmatprep.subr.mxu0 0.0
    %166 = vmatpush1.msra.mxu0 0.0
    %167 = vmatprep.subr.mxu0 0.0
    %168 = vmatpush1.msra.mxu0 0.0
    %169 = vmatprep.subr.mxu0 0.0
    %170 = vmatpush1.msra.mxu0 0.0
    %171 = vmatprep.subr.mxu0 0.0
    %172 = vmatpush1.msra.mxu0 0.0
    %173 = vmatprep.subr.mxu0 0.0
    %174 = vmatpush1.msra.mxu0 0.0
    %175 = vmatprep.subr.mxu0 0.0
    %176 = vmatpush1.msra.mxu0 0.0
    %177 = vmatprep.subr.mxu0 0.0
    %178 = vmatpush1.msra.mxu0 0.0
    %179 = vmatprep.subr.mxu0 0.0
    %180 = vmatpush1.msra.mxu0 0.0
    %181 = vmatprep.subr.mxu0 0.0
    %182 = vmatpush1.msra.mxu0 0.0
    %183 = vmatprep.subr.mxu0 0.0
    %184 = vmatpush1.msra.mxu0 0.0
    %185 = vmatprep.subr.mxu0 0.0
    %186 = vmatpush1.msra.mxu0 0.0
    %187 = vmatprep.subr.mxu0 0.0
    %188 = vmatpush1.msra.mxu0 0.0
    %189 = vmatprep.subr.mxu0 0.0
    %190 = vmatpush1.msra.mxu0 0.0
    %191 = vmatprep.subr.mxu0 0.0
    %192 = vmatpush1.msra.mxu0 0.0
    %193 = vmatprep.subr.mxu0 0.0
    %194 = vmatpush1.msra.mxu0 0.0
    %195 = vmatprep.subr.mxu0 0.0
    %196 = vmatpush1.msra.mxu0 0.0
    %197 = vmatprep.subr.mxu0 0.0
    %198 = vmatpush1.msra.mxu0 0.0
    %199 = vmatprep.subr.mxu0 0.0
    %200 = vmatpush1.msra.mxu0 0.0
    %201 = vmatprep.subr.mxu0 0.0
    %202 = vmatpush1.msra.mxu0 0.0
    %203 = vmatprep.subr.mxu0 0.0
    %204 = vmatpush1.msra.mxu0 0.0
    %205 = vmatprep.subr.mxu0 0.0
    %206 = vmatpush1.msra.mxu0 0.0
    %207 = vmatprep.subr.mxu0 0.0
    %208 = vmatpush1.msra.mxu0 0.0
    %209 = vmatprep.subr.mxu0 0.0
    %210 = vmatpush1.msra.mxu0 0.0
    %211 = vmatprep.subr.mxu0 0.0
    %212 = vmatpush1.msra.mxu0 0.0
    %213 = vmatprep.subr.mxu0 0.0
    %214 = vmatpush1.msra.mxu0 0.0
    %215 = vmatprep.subr.mxu0 0.0
    %216 = vmatpush1.msra.mxu0 0.0
    %217 = vmatprep.mubr.f32.mxu0 0.0
    %218 = vmatmul.mubr.f32.gmra.mrb[0].mxu0 %v151
    %v219 = vpop.f32.mrb[0].mxu0
    %v220 = vadd.f32 %v147, %v219
    %v221 = vpop.f32.mrb[0].mxu0
    %222 = vdwg.mxu0
    %v223 = vmax.f32 %v220, 0.0
    %v224 = vld [vmem:[%s5] sm:$0xff]
    %v225 = vld [vmem:[%s5 + $0x8] sm:$0xff]
    %v226 = vld [vmem:[%s5 + $0x10] sm:$0xff]
    %v227 = vld [vmem:[%s5 + $0x18] sm:$0xff]
    %v228 = vld [vmem:[#allocation2] sm:$0x1]
    %230 = vset.pattern.permute.xlu0 0
    %231 = vperm.xlu0 %230, %v228
    %v232 = vpop.permute.xlu0 %231
    %v234 = vlaneseq
    %v235 = vshrl.u32 %v234, 7
    %v236 = vsub.s32 0, %v235
    %v237 = vrot.slane %v232, %v236
    %238 = vxpose.xlu0.b32.start [1/16] %v224, 128
    %239 = vxpose.xlu0.b32.cont [2/16] %v225, 128
    %240 = vxpose.xlu0.b32.cont [3/16] %v226, 128
    %241 = vxpose.xlu0.b32.cont [4/16] %v227, 128
    %242 = vxpose.xlu0.b32.cont [5/16] 0.0, 128
    %243 = vxpose.xlu0.b32.cont [6/16] 0.0, 128
    %244 = vxpose.xlu0.b32.cont [7/16] 0.0, 128
    %245 = vxpose.xlu0.b32.cont [8/16] 0.0, 128
    %246 = vxpose.xlu0.b32.cont [9/16] 0.0, 128
    %247 = vxpose.xlu0.b32.cont [10/16] 0.0, 128
    %248 = vxpose.xlu0.b32.cont [11/16] 0.0, 128
    %249 = vxpose.xlu0.b32.cont [12/16] 0.0, 128
    %250 = vxpose.xlu0.b32.cont [13/16] 0.0, 128
    %251 = vxpose.xlu0.b32.cont [14/16] 0.0, 128
    %252 = vxpose.xlu0.b32.cont [15/16] 0.0, 128
    %253 = vxpose.xlu0.b32.end [16/16] 0.0, 128
    %v254 = vpop.trf.xlu0
    %v255 = vpop.trf.xlu0
    %v256 = vpop.trf.xlu0
    %v257 = vpop.trf.xlu0
    %v258 = vpop.trf.xlu0
    %v259 = vpop.trf.xlu0
    %v260 = vpop.trf.xlu0
    %v261 = vpop.trf.xlu0
    %v262 = vpop.trf.xlu0
    %v263 = vpop.trf.xlu0
    %v264 = vpop.trf.xlu0
    %v265 = vpop.trf.xlu0
    %v266 = vpop.trf.xlu0
    %v267 = vpop.trf.xlu0
    %v268 = vpop.trf.xlu0
    %v269 = vpop.trf.xlu0
    %v271 = vsel %vm149, %v254, 0
    %v274 = vsel %vm149, %v223, 0
    %276 = vmatprep.subr.mxu0 0.0
    %277 = vmatpush1.xpose.msra.mxu0 %v274
    %278 = vmatprep.subr.mxu0 0.0
    %279 = vmatpush1.xpose.msra.mxu0 0.0
    %280 = vmatprep.subr.mxu0 0.0
    %281 = vmatpush1.xpose.msra.mxu0 0.0
    %282 = vmatprep.subr.mxu0 0.0
    %283 = vmatpush1.xpose.msra.mxu0 0.0
    %284 = vmatprep.subr.mxu0 0.0
    %285 = vmatpush1.xpose.msra.mxu0 0.0
    %286 = vmatprep.subr.mxu0 0.0
    %287 = vmatpush1.xpose.msra.mxu0 0.0
    %288 = vmatprep.subr.mxu0 0.0
    %289 = vmatpush1.xpose.msra.mxu0 0.0
    %290 = vmatprep.subr.mxu0 0.0
    %291 = vmatpush1.xpose.msra.mxu0 0.0
    %292 = vmatprep.subr.mxu0 0.0
    %293 = vmatpush1.xpose.msra.mxu0 0.0
    %294 = vmatprep.subr.mxu0 0.0
    %295 = vmatpush1.xpose.msra.mxu0 0.0
    %296 = vmatprep.subr.mxu0 0.0
    %297 = vmatpush1.xpose.msra.mxu0 0.0
    %298 = vmatprep.subr.mxu0 0.0
    %299 = vmatpush1.xpose.msra.mxu0 0.0
    %300 = vmatprep.subr.mxu0 0.0
    %301 = vmatpush1.xpose.msra.mxu0 0.0
    %302 = vmatprep.subr.mxu0 0.0
    %303 = vmatpush1.xpose.msra.mxu0 0.0
    %304 = vmatprep.subr.mxu0 0.0
    %305 = vmatpush1.xpose.msra.mxu0 0.0
    %306 = vmatprep.subr.mxu0 0.0
    %307 = vmatpush1.xpose.msra.mxu0 0.0
    %308 = vmatprep.subr.mxu0 0.0
    %309 = vmatpush1.xpose.msra.mxu0 0.0
    %310 = vmatprep.subr.mxu0 0.0
    %311 = vmatpush1.xpose.msra.mxu0 0.0
    %312 = vmatprep.subr.mxu0 0.0
    %313 = vmatpush1.xpose.msra.mxu0 0.0
    %314 = vmatprep.subr.mxu0 0.0
    %315 = vmatpush1.xpose.msra.mxu0 0.0
    %316 = vmatprep.subr.mxu0 0.0
    %317 = vmatpush1.xpose.msra.mxu0 0.0
    %318 = vmatprep.subr.mxu0 0.0
    %319 = vmatpush1.xpose.msra.mxu0 0.0
    %320 = vmatprep.subr.mxu0 0.0
    %321 = vmatpush1.xpose.msra.mxu0 0.0
    %322 = vmatprep.subr.mxu0 0.0
    %323 = vmatpush1.xpose.msra.mxu0 0.0
    %324 = vmatprep.subr.mxu0 0.0
    %325 = vmatpush1.xpose.msra.mxu0 0.0
    %326 = vmatprep.subr.mxu0 0.0
    %327 = vmatpush1.xpose.msra.mxu0 0.0
    %328 = vmatprep.subr.mxu0 0.0
    %329 = vmatpush1.xpose.msra.mxu0 0.0
    %330 = vmatprep.subr.mxu0 0.0
    %331 = vmatpush1.xpose.msra.mxu0 0.0
    %332 = vmatprep.subr.mxu0 0.0
    %333 = vmatpush1.xpose.msra.mxu0 0.0
    %334 = vmatprep.subr.mxu0 0.0
    %335 = vmatpush1.xpose.msra.mxu0 0.0
    %336 = vmatprep.subr.mxu0 0.0
    %337 = vmatpush1.xpose.msra.mxu0 0.0
    %338 = vmatprep.subr.mxu0 0.0
    %339 = vmatpush1.xpose.msra.mxu0 0.0
    %340 = vmatprep.mubr.f32.mxu0 0.0
    %341 = vmatmul.mubr.f32.gmra.mrb[0].mxu0 %v271
    %v342 = vpop.f32.mrb[0].mxu0
    %v343 = vadd.f32 %v237, %v342
    %v344 = vpop.f32.mrb[0].mxu0
    %345 = vdwg.mxu0
    %v346 = vxor.u32 %v343, 2147483648
    %v347 = vmul.f32 %v346, 1.442695
    %v348 = vpow.pop %v347
    %v349 = vadd.f32 %v348, 1.0
    %v350 = vrcp.pop %v349
    %v351 = vmul.f32 1.0, %v350
    %vm352 = vcmask 57344
    %353 = vst.msk [vmem:[#allocation8] sm:$0x1] %vm352, %v351
    // Predicated region
    $region38: #{tpu_custom_call.1} parent=1 // pred_check
      _
    $region39: #{tpu_custom_call.1} parent=1 // pred_check_branch
      %355 = sbr.rel (0) target = $region41
    $region40: #{tpu_custom_call.1} parent=1 // pred_region
      %s357 = ssub.s32 16, 16
      %358 = vsyncadd [#allocation5], %s357
      %s360 = sshll.u32 [#allocation8], 4
      %s361 = int_to_ptr.vmem [resolvable:$true] %s360
      %363 = dma.vmem_to_hbm [thread:$0]  %s361, 16, %s7, [#allocation5]
    $region41: #{tpu_custom_call.1} parent=1 // pred_fallthru
      _
    // Predicated region
    $region42: #{tpu_custom_call.1} parent=1 // pred_check
      _
    $region43: #{tpu_custom_call.1} parent=1 // pred_check_branch
      %365 = sbr.rel (0) target = $region45
    $region44: #{tpu_custom_call.1} parent=1 // pred_region
      %366 = dma.done [#allocation5], 16
    $region45: #{tpu_custom_call.1} parent=1 // pred_fallthru
      _
    %367 = vsyncpa [#allocation4], 1
    %368 = vsyncpa [#allocation7], 1
    %369 = vsyncpa [#allocation5], 1

// kernel: tpu_custom_call.1
$region0: #{tpu_custom_call.1}
  #allocation0 [shape = 'u32[]', space=smem, size = 0x4, offset = 0x4, fixed_abs, tag = 'smem constant byte address 0x4 - core index']
  #allocation1 [shape = 'u32[144,128]{1,0:T(1,128)}', space=vmem, size = 0x12000, scoped, tag = 'internal scratch']
  #allocation2 [shape = 'f32[1,1]{1,0:T(1,128)S(1)}', space=vmem, size = 0x200, scoped, tag = 'scoped memory for tpu_custom_call.1']
  %s0 = inlined_call_operand.hbm [shape: f32[8,16], index: 0, kind: input, shape index: {}]
  %s1 = inlined_call_operand.vmem [shape: f32[16,32], index: 1, kind: input, shape index: {}]
  %s2 = inlined_call_operand.hbm [shape: f32[1,32], index: 2, kind: input, shape index: {}]
  %s3 = inlined_call_operand.vmem [shape: f32[32,32], index: 3, kind: input, shape index: {}]
  %s4 = inlined_call_operand.vmem [shape: f32[1,32], index: 4, kind: input, shape index: {}]
  %s5 = inlined_call_operand.vmem [shape: f32[32,1], index: 5, kind: input, shape index: {}]
  %s6 = inlined_call_operand.<no memory space> [shape: f32[1,1], index: 6, kind: input, shape index: {}]
  %s7 = inlined_call_operand.hbm [shape: f32[1,8], index: 7, kind: output, shape index: {}]
  %s8 = sld [smem:[#allocation0]]
  $region46: #{tpu_custom_call.1} parent=0
    _
  %s10 = ssub.s32 1, %s8
  %s11 = scalar_select 0, %s10, %s8
  %v12 = vstv %s6
  %13 = vst [vmem:[#allocation2] sm:$0x1] %v12
  $region1: #{tpu_custom_call.1} parent=0
    #allocation3 [shape = 'u8[4096]{0}', space=vmem, size = 0x1000, scoped, tag = 'input window, operand 0, single buffered']
    #allocation4 [shape = 's32[1]{0}', space=sflag, size = 0x4, scoped, tag = 'scoped memory for tpu_custom_call.1']
    #allocation5 [shape = 's32[1]{0}', space=sflag, size = 0x4, scoped, tag = 'scoped memory for tpu_custom_call.1']
    #allocation6 [shape = 'u8[512]{0}', space=vmem, size = 0x400, scoped, tag = 'input window, operand 2, single buffered']
    #allocation7 [shape = 's32[1]{0}', space=sflag, size = 0x4, scoped, tag = 'scoped memory for tpu_custom_call.1']
    #allocation8 [shape = 'u8[512]{0}', space=vmem, size = 0x400, scoped, tag = 'output window, operand 0, single buffered']
    %14 = vsyncpa [#allocation4], 0
    %15 = vsyncpa [#allocation7], 0
    %16 = vsyncpa [#allocation5], 0
    // Predicated region
    $region2: #{tpu_custom_call.1} parent=1 // pred_check
      _
    $region3: #{tpu_custom_call.1} parent=1 // pred_check_branch
      %18 = sbr.rel (0) target = $region5
    $region4: #{tpu_custom_call.1} parent=1 // pred_region
      %s20 = ssub.s32 128, 128
      %21 = vsyncadd [#allocation4], %s20
      %s23 = sshll.u32 [#allocation3], 4
      %s24 = int_to_ptr.vmem [resolvable:$true] %s23
      %26 = dma.hbm_to_vmem [thread:$0]  %s0, 128, %s24, [#allocation4]
    $region5: #{tpu_custom_call.1} parent=1 // pred_fallthru
      _
    // Predicated region
    $region6: #{tpu_custom_call.1} parent=1 // pred_check
      _
    $region7: #{tpu_custom_call.1} parent=1 // pred_check_branch
      %28 = sbr.rel (0) target = $region9
    $region8: #{tpu_custom_call.1} parent=1 // pred_region
      _
    $region9: #{tpu_custom_call.1} parent=1 // pred_fallthru
      _
    // Predicated region
    $region10: #{tpu_custom_call.1} parent=1 // pred_check
      _
    $region11: #{tpu_custom_call.1} parent=1 // pred_check_branch
      %30 = sbr.rel (0) target = $region13
    $region12: #{tpu_custom_call.1} parent=1 // pred_region
      %s32 = ssub.s32 16, 16
      %33 = vsyncadd [#allocation7], %s32
      %s35 = sshll.u32 [#allocation6], 4
      %s36 = int_to_ptr.vmem [resolvable:$true] %s35
      %38 = dma.hbm_to_vmem [thread:$0]  %s2, 16, %s36, [#allocation7]
    $region13: #{tpu_custom_call.1} parent=1 // pred_fallthru
      _
    // Predicated region
    $region14: #{tpu_custom_call.1} parent=1 // pred_check
      _
    $region15: #{tpu_custom_call.1} parent=1 // pred_check_branch
      %40 = sbr.rel (0) target = $region17
    $region16: #{tpu_custom_call.1} parent=1 // pred_region
      _
    $region17: #{tpu_custom_call.1} parent=1 // pred_fallthru
      _
    // Predicated region
    $region18: #{tpu_custom_call.1} parent=1 // pred_check
      _
    $region19: #{tpu_custom_call.1} parent=1 // pred_check_branch
      %42 = sbr.rel (0) target = $region21
    $region20: #{tpu_custom_call.1} parent=1 // pred_region
      _
    $region21: #{tpu_custom_call.1} parent=1 // pred_fallthru
      _
    // Predicated region
    $region22: #{tpu_custom_call.1} parent=1 // pred_check
      _
    $region23: #{tpu_custom_call.1} parent=1 // pred_check_branch
      %44 = sbr.rel (0) target = $region25
    $region24: #{tpu_custom_call.1} parent=1 // pred_region
      _
    $region25: #{tpu_custom_call.1} parent=1 // pred_fallthru
      _
    // Predicated region
    $region26: #{tpu_custom_call.1} parent=1 // pred_check
      _
    $region27: #{tpu_custom_call.1} parent=1 // pred_check_branch
      %46 = sbr.rel (0) target = $region29
    $region28: #{tpu_custom_call.1} parent=1 // pred_region
      _
    $region29: #{tpu_custom_call.1} parent=1 // pred_fallthru
      _
    // Predicated region
    $region30: #{tpu_custom_call.1} parent=1 // pred_check
      _
    $region31: #{tpu_custom_call.1} parent=1 // pred_check_branch
      %48 = sbr.rel (0) target = $region33
    $region32: #{tpu_custom_call.1} parent=1 // pred_region
      %49 = dma.done [#allocation4], 128
    $region33: #{tpu_custom_call.1} parent=1 // pred_fallthru
      _
    // Predicated region
    $region34: #{tpu_custom_call.1} parent=1 // pred_check
      _
    $region35: #{tpu_custom_call.1} parent=1 // pred_check_branch
      %51 = sbr.rel (0) target = $region37
    $region36: #{tpu_custom_call.1} parent=1 // pred_region
      %52 = dma.done [#allocation7], 16
    $region37: #{tpu_custom_call.1} parent=1 // pred_fallthru
      _
    %v53 = vld [vmem:[#allocation3] sm:$0xff]
    %v54 = vld [vmem:[%s1] sm:$0xff]
    %v55 = vld [vmem:[%s1 + $0x8] sm:$0xff]
    %v56 = vld [vmem:[#allocation6] sm:$0x1]
    %v58 = vlaneseq
    %v59 = vshrl.u32 %v58, 7
    %v60 = vsub.s32 0, %v59
    %v61 = vrot.slane %v56, %v60
    %vm63 = vcmask 130048
    %v65 = vsel %vm63, %v53, 0
    %67 = vmatprep.subr.mxu0 0.0
    %68 = vmatpush1.msra.mxu0 %v54
    %69 = vmatprep.subr.mxu0 0.0
    %70 = vmatpush1.msra.mxu0 %v55
    %71 = vmatprep.subr.mxu0 0.0
    %72 = vmatpush1.msra.mxu0 0.0
    %73 = vmatprep.subr.mxu0 0.0
    %74 = vmatpush1.msra.mxu0 0.0
    %75 = vmatprep.subr.mxu0 0.0
    %76 = vmatpush1.msra.mxu0 0.0
    %77 = vmatprep.subr.mxu0 0.0
    %78 = vmatpush1.msra.mxu0 0.0
    %79 = vmatprep.subr.mxu0 0.0
    %80 = vmatpush1.msra.mxu0 0.0
    %81 = vmatprep.subr.mxu0 0.0
    %82 = vmatpush1.msra.mxu0 0.0
    %83 = vmatprep.subr.mxu0 0.0
    %84 = vmatpush1.msra.mxu0 0.0
    %85 = vmatprep.subr.mxu0 0.0
    %86 = vmatpush1.msra.mxu0 0.0
    %87 = vmatprep.subr.mxu0 0.0
    %88 = vmatpush1.msra.mxu0 0.0
    %89 = vmatprep.subr.mxu0 0.0
    %90 = vmatpush1.msra.mxu0 0.0
    %91 = vmatprep.subr.mxu0 0.0
    %92 = vmatpush1.msra.mxu0 0.0
    %93 = vmatprep.subr.mxu0 0.0
    %94 = vmatpush1.msra.mxu0 0.0
    %95 = vmatprep.subr.mxu0 0.0
    %96 = vmatpush1.msra.mxu0 0.0
    %97 = vmatprep.subr.mxu0 0.0
    %98 = vmatpush1.msra.mxu0 0.0
    %99 = vmatprep.subr.mxu0 0.0
    %100 = vmatpush1.msra.mxu0 0.0
    %101 = vmatprep.subr.mxu0 0.0
    %102 = vmatpush1.msra.mxu0 0.0
    %103 = vmatprep.subr.mxu0 0.0
    %104 = vmatpush1.msra.mxu0 0.0
    %105 = vmatprep.subr.mxu0 0.0
    %106 = vmatpush1.msra.mxu0 0.0
    %107 = vmatprep.subr.mxu0 0.0
    %108 = vmatpush1.msra.mxu0 0.0
    %109 = vmatprep.subr.mxu0 0.0
    %110 = vmatpush1.msra.mxu0 0.0
    %111 = vmatprep.subr.mxu0 0.0
    %112 = vmatpush1.msra.mxu0 0.0
    %113 = vmatprep.subr.mxu0 0.0
    %114 = vmatpush1.msra.mxu0 0.0
    %115 = vmatprep.subr.mxu0 0.0
    %116 = vmatpush1.msra.mxu0 0.0
    %117 = vmatprep.subr.mxu0 0.0
    %118 = vmatpush1.msra.mxu0 0.0
    %119 = vmatprep.subr.mxu0 0.0
    %120 = vmatpush1.msra.mxu0 0.0
    %121 = vmatprep.subr.mxu0 0.0
    %122 = vmatpush1.msra.mxu0 0.0
    %123 = vmatprep.subr.mxu0 0.0
    %124 = vmatpush1.msra.mxu0 0.0
    %125 = vmatprep.subr.mxu0 0.0
    %126 = vmatpush1.msra.mxu0 0.0
    %127 = vmatprep.subr.mxu0 0.0
    %128 = vmatpush1.msra.mxu0 0.0
    %129 = vmatprep.subr.mxu0 0.0
    %130 = vmatpush1.msra.mxu0 0.0
    %131 = vmatprep.mubr.f32.mxu0 0.0
    %132 = vmatmul.mubr.f32.gmra.mrb[0].mxu0 %v65
    %v133 = vpop.f32.mrb[0].mxu0
    %v134 = vadd.f32 %v61, %v133
    %v135 = vpop.f32.mrb[0].mxu0
    %136 = vdwg.mxu0
    %v137 = vmax.f32 %v134, 0.0
    %v138 = vld [vmem:[%s3] sm:$0xff]
    %v139 = vld [vmem:[%s3 + $0x8] sm:$0xff]
    %v140 = vld [vmem:[%s3 + $0x10] sm:$0xff]
    %v141 = vld [vmem:[%s3 + $0x18] sm:$0xff]
    %v142 = vld [vmem:[%s4] sm:$0x1]
    %v144 = vlaneseq
    %v145 = vshrl.u32 %v144, 7
    %v146 = vsub.s32 0, %v145
    %v147 = vrot.slane %v142, %v146
    %vm149 = vcmask 261120
    %v151 = vsel %vm149, %v137, 0
    %153 = vmatprep.subr.mxu0 0.0
    %154 = vmatpush1.msra.mxu0 %v138
    %155 = vmatprep.subr.mxu0 0.0
    %156 = vmatpush1.msra.mxu0 %v139
    %157 = vmatprep.subr.mxu0 0.0
    %158 = vmatpush1.msra.mxu0 %v140
    %159 = vmatprep.subr.mxu0 0.0
    %160 = vmatpush1.msra.mxu0 %v141
    %161 = vmatprep.subr.mxu0 0.0
    %162 = vmatpush1.msra.mxu0 0.0
    %163 = vmatprep.subr.mxu0 0.0
    %164 = vmatpush1.msra.mxu0 0.0
    %165 = vmatprep.subr.mxu0 0.0
    %166 = vmatpush1.msra.mxu0 0.0
    %167 = vmatprep.subr.mxu0 0.0
    %168 = vmatpush1.msra.mxu0 0.0
    %169 = vmatprep.subr.mxu0 0.0
    %170 = vmatpush1.msra.mxu0 0.0
    %171 = vmatprep.subr.mxu0 0.0
    %172 = vmatpush1.msra.mxu0 0.0
    %173 = vmatprep.subr.mxu0 0.0
    %174 = vmatpush1.msra.mxu0 0.0
    %175 = vmatprep.subr.mxu0 0.0
    %176 = vmatpush1.msra.mxu0 0.0
    %177 = vmatprep.subr.mxu0 0.0
    %178 = vmatpush1.msra.mxu0 0.0
    %179 = vmatprep.subr.mxu0 0.0
    %180 = vmatpush1.msra.mxu0 0.0
    %181 = vmatprep.subr.mxu0 0.0
    %182 = vmatpush1.msra.mxu0 0.0
    %183 = vmatprep.subr.mxu0 0.0
    %184 = vmatpush1.msra.mxu0 0.0
    %185 = vmatprep.subr.mxu0 0.0
    %186 = vmatpush1.msra.mxu0 0.0
    %187 = vmatprep.subr.mxu0 0.0
    %188 = vmatpush1.msra.mxu0 0.0
    %189 = vmatprep.subr.mxu0 0.0
    %190 = vmatpush1.msra.mxu0 0.0
    %191 = vmatprep.subr.mxu0 0.0
    %192 = vmatpush1.msra.mxu0 0.0
    %193 = vmatprep.subr.mxu0 0.0
    %194 = vmatpush1.msra.mxu0 0.0
    %195 = vmatprep.subr.mxu0 0.0
    %196 = vmatpush1.msra.mxu0 0.0
    %197 = vmatprep.subr.mxu0 0.0
    %198 = vmatpush1.msra.mxu0 0.0
    %199 = vmatprep.subr.mxu0 0.0
    %200 = vmatpush1.msra.mxu0 0.0
    %201 = vmatprep.subr.mxu0 0.0
    %202 = vmatpush1.msra.mxu0 0.0
    %203 = vmatprep.subr.mxu0 0.0
    %204 = vmatpush1.msra.mxu0 0.0
    %205 = vmatprep.subr.mxu0 0.0
    %206 = vmatpush1.msra.mxu0 0.0
    %207 = vmatprep.subr.mxu0 0.0
    %208 = vmatpush1.msra.mxu0 0.0
    %209 = vmatprep.subr.mxu0 0.0
    %210 = vmatpush1.msra.mxu0 0.0
    %211 = vmatprep.subr.mxu0 0.0
    %212 = vmatpush1.msra.mxu0 0.0
    %213 = vmatprep.subr.mxu0 0.0
    %214 = vmatpush1.msra.mxu0 0.0
    %215 = vmatprep.subr.mxu0 0.0
    %216 = vmatpush1.msra.mxu0 0.0
    %217 = vmatprep.mubr.f32.mxu0 0.0
    %218 = vmatmul.mubr.f32.gmra.mrb[0].mxu0 %v151
    %v219 = vpop.f32.mrb[0].mxu0
    %v220 = vadd.f32 %v147, %v219
    %v221 = vpop.f32.mrb[0].mxu0
    %222 = vdwg.mxu0
    %v223 = vmax.f32 %v220, 0.0
    %v224 = vld [vmem:[%s5] sm:$0xff]
    %v225 = vld [vmem:[%s5 + $0x8] sm:$0xff]
    %v226 = vld [vmem:[%s5 + $0x10] sm:$0xff]
    %v227 = vld [vmem:[%s5 + $0x18] sm:$0xff]
    %v228 = vld [vmem:[#allocation2] sm:$0x1]
    %230 = vset.pattern.permute.xlu0 0
    %231 = vperm.xlu0 %230, %v228
    %v232 = vpop.permute.xlu0 %231
    %v234 = vlaneseq
    %v235 = vshrl.u32 %v234, 7
    %v236 = vsub.s32 0, %v235
    %v237 = vrot.slane %v232, %v236
    %238 = vxpose.xlu0.b32.start [1/16] %v224, 128
    %239 = vxpose.xlu0.b32.cont [2/16] %v225, 128
    %240 = vxpose.xlu0.b32.cont [3/16] %v226, 128
    %241 = vxpose.xlu0.b32.cont [4/16] %v227, 128
    %242 = vxpose.xlu0.b32.cont [5/16] 0.0, 128
    %243 = vxpose.xlu0.b32.cont [6/16] 0.0, 128
    %244 = vxpose.xlu0.b32.cont [7/16] 0.0, 128
    %245 = vxpose.xlu0.b32.cont [8/16] 0.0, 128
    %246 = vxpose.xlu0.b32.cont [9/16] 0.0, 128
    %247 = vxpose.xlu0.b32.cont [10/16] 0.0, 128
    %248 = vxpose.xlu0.b32.cont [11/16] 0.0, 128
    %249 = vxpose.xlu0.b32.cont [12/16] 0.0, 128
    %250 = vxpose.xlu0.b32.cont [13/16] 0.0, 128
    %251 = vxpose.xlu0.b32.cont [14/16] 0.0, 128
    %252 = vxpose.xlu0.b32.cont [15/16] 0.0, 128
    %253 = vxpose.xlu0.b32.end [16/16] 0.0, 128
    %v254 = vpop.trf.xlu0
    %v255 = vpop.trf.xlu0
    %v256 = vpop.trf.xlu0
    %v257 = vpop.trf.xlu0
    %v258 = vpop.trf.xlu0
    %v259 = vpop.trf.xlu0
    %v260 = vpop.trf.xlu0
    %v261 = vpop.trf.xlu0
    %v262 = vpop.trf.xlu0
    %v263 = vpop.trf.xlu0
    %v264 = vpop.trf.xlu0
    %v265 = vpop.trf.xlu0
    %v266 = vpop.trf.xlu0
    %v267 = vpop.trf.xlu0
    %v268 = vpop.trf.xlu0
    %v269 = vpop.trf.xlu0
    %v271 = vsel %vm149, %v254, 0
    %v274 = vsel %vm149, %v223, 0
    %276 = vmatprep.subr.mxu0 0.0
    %277 = vmatpush1.xpose.msra.mxu0 %v274
    %278 = vmatprep.subr.mxu0 0.0
    %279 = vmatpush1.xpose.msra.mxu0 0.0
    %280 = vmatprep.subr.mxu0 0.0
    %281 = vmatpush1.xpose.msra.mxu0 0.0
    %282 = vmatprep.subr.mxu0 0.0
    %283 = vmatpush1.xpose.msra.mxu0 0.0
    %284 = vmatprep.subr.mxu0 0.0
    %285 = vmatpush1.xpose.msra.mxu0 0.0
    %286 = vmatprep.subr.mxu0 0.0
    %287 = vmatpush1.xpose.msra.mxu0 0.0
    %288 = vmatprep.subr.mxu0 0.0
    %289 = vmatpush1.xpose.msra.mxu0 0.0
    %290 = vmatprep.subr.mxu0 0.0
    %291 = vmatpush1.xpose.msra.mxu0 0.0
    %292 = vmatprep.subr.mxu0 0.0
    %293 = vmatpush1.xpose.msra.mxu0 0.0
    %294 = vmatprep.subr.mxu0 0.0
    %295 = vmatpush1.xpose.msra.mxu0 0.0
    %296 = vmatprep.subr.mxu0 0.0
    %297 = vmatpush1.xpose.msra.mxu0 0.0
    %298 = vmatprep.subr.mxu0 0.0
    %299 = vmatpush1.xpose.msra.mxu0 0.0
    %300 = vmatprep.subr.mxu0 0.0
    %301 = vmatpush1.xpose.msra.mxu0 0.0
    %302 = vmatprep.subr.mxu0 0.0
    %303 = vmatpush1.xpose.msra.mxu0 0.0
    %304 = vmatprep.subr.mxu0 0.0
    %305 = vmatpush1.xpose.msra.mxu0 0.0
    %306 = vmatprep.subr.mxu0 0.0
    %307 = vmatpush1.xpose.msra.mxu0 0.0
    %308 = vmatprep.subr.mxu0 0.0
    %309 = vmatpush1.xpose.msra.mxu0 0.0
    %310 = vmatprep.subr.mxu0 0.0
    %311 = vmatpush1.xpose.msra.mxu0 0.0
    %312 = vmatprep.subr.mxu0 0.0
    %313 = vmatpush1.xpose.msra.mxu0 0.0
    %314 = vmatprep.subr.mxu0 0.0
    %315 = vmatpush1.xpose.msra.mxu0 0.0
    %316 = vmatprep.subr.mxu0 0.0
    %317 = vmatpush1.xpose.msra.mxu0 0.0
    %318 = vmatprep.subr.mxu0 0.0
    %319 = vmatpush1.xpose.msra.mxu0 0.0
    %320 = vmatprep.subr.mxu0 0.0
    %321 = vmatpush1.xpose.msra.mxu0 0.0
    %322 = vmatprep.subr.mxu0 0.0
    %323 = vmatpush1.xpose.msra.mxu0 0.0
    %324 = vmatprep.subr.mxu0 0.0
    %325 = vmatpush1.xpose.msra.mxu0 0.0
    %326 = vmatprep.subr.mxu0 0.0
    %327 = vmatpush1.xpose.msra.mxu0 0.0
    %328 = vmatprep.subr.mxu0 0.0
    %329 = vmatpush1.xpose.msra.mxu0 0.0
    %330 = vmatprep.subr.mxu0 0.0
    %331 = vmatpush1.xpose.msra.mxu0 0.0
    %332 = vmatprep.subr.mxu0 0.0
    %333 = vmatpush1.xpose.msra.mxu0 0.0
    %334 = vmatprep.subr.mxu0 0.0
    %335 = vmatpush1.xpose.msra.mxu0 0.0
    %336 = vmatprep.subr.mxu0 0.0
    %337 = vmatpush1.xpose.msra.mxu0 0.0
    %338 = vmatprep.subr.mxu0 0.0
    %339 = vmatpush1.xpose.msra.mxu0 0.0
    %340 = vmatprep.mubr.f32.mxu0 0.0
    %341 = vmatmul.mubr.f32.gmra.mrb[0].mxu0 %v271
    %v342 = vpop.f32.mrb[0].mxu0
    %v343 = vadd.f32 %v237, %v342
    %v344 = vpop.f32.mrb[0].mxu0
    %345 = vdwg.mxu0
    %v346 = vxor.u32 %v343, 2147483648
    %v347 = vmul.f32 %v346, 1.442695
    %v348 = vpow.pop %v347
    %v349 = vadd.f32 %v348, 1.0
    %v350 = vrcp.pop %v349
    %v351 = vmul.f32 1.0, %v350
    %vm352 = vcmask 57344
    %353 = vst.msk [vmem:[#allocation8] sm:$0x1] %vm352, %v351
    // Predicated region
    $region38: #{tpu_custom_call.1} parent=1 // pred_check
      _
    $region39: #{tpu_custom_call.1} parent=1 // pred_check_branch
      %355 = sbr.rel (0) target = $region41
    $region40: #{tpu_custom_call.1} parent=1 // pred_region
      %s357 = ssub.s32 16, 16
      %358 = vsyncadd [#allocation5], %s357
      %s360 = sshll.u32 [#allocation8], 4
      %s361 = int_to_ptr.vmem [resolvable:$true] %s360
      %363 = dma.vmem_to_hbm [thread:$0]  %s361, 16, %s7, [#allocation5]
    $region41: #{tpu_custom_call.1} parent=1 // pred_fallthru
      _
    // Predicated region
    $region42: #{tpu_custom_call.1} parent=1 // pred_check
      _
    $region43: #{tpu_custom_call.1} parent=1 // pred_check_branch
      %365 = sbr.rel (0) target = $region45
    $region44: #{tpu_custom_call.1} parent=1 // pred_region
      %366 = dma.done [#allocation5], 16
    $region45: #{tpu_custom_call.1} parent=1 // pred_fallthru
      _
    %367 = vsyncpa [#allocation4], 1
    %368 = vsyncpa [#allocation7], 1
    %369 = vsyncpa [#allocation5], 1

</llo_original>
